<compile_context>
chip_gen: v7x
topology: tpu7x:2x2x1
jax: 0.10.0
libtpu: 0.0.40
codegen_flags: <defaults>
</compile_context>

<pallas_src>
import functools
import math
from typing import List, Sequence, Tuple

import jax
import jax.numpy as jnp
from jax.experimental import pallas as pl
from jax.experimental.pallas import tpu as pltpu

_LANE = 128     # lane width: feature/out dims padded per-layer to a multiple of this
_SUBLANE = 8    # f32 sublane width: batch tile padded to a multiple of this


def _round_up(x: int, m: int) -> int:
    return ((x + m - 1) // m) * m


# ----------------------------------------------------------------------------
# Fused kernel: one (Bt, F_pad) batch tile through every layer of every head.
#   refs = (w_0, b_0, w_1, b_1, ..., o_0, o_1, ...)
#     w_h : (L_h, D_h, D_h) stacked, zero-padded weights in compute_dtype
#           (VMEM-resident, single-buffered, grid-invariant index_map)
#     b_h : (L_h, 1, D_h)   stacked, zero-padded f32 biases
#     o_h : (Bt, n_pad_last_h) lane-dense per-head output slab
#   layer_dims[h][l] = (k_pad, n_pad): this layer's true in/out dims rounded to
#   128; matmuls use static ref slices of those sizes (free, lane-aligned).
# ----------------------------------------------------------------------------
def _fused_heads_kernel(x_ref, *refs, layer_dims: Tuple[Tuple[Tuple[int, int], ...], ...],
                        compute_dtype):
    n_heads = len(layer_dims)
    w_refs = [refs[2 * h] for h in range(n_heads)]
    b_refs = [refs[2 * h + 1] for h in range(n_heads)]
    o_refs = list(refs[2 * n_heads:])

    x = x_ref[...].astype(compute_dtype)          # one cast, shared by both heads
    for h in range(n_heads):
        dims = layer_dims[h]
        act = x
        for l, (k_pad, n_pad) in enumerate(dims):  # static unroll (layer count tiny)
            w = w_refs[h][l, :k_pad, :n_pad]       # static 128-aligned slice of resident weights
            y = jnp.dot(act, w, preferred_element_type=jnp.float32)
            # bias + ReLU epilogue stays in f32 on the accumulator (VPU, no bf16 needed)
            y = jnp.maximum(y + b_refs[h][l, :, :n_pad], 0.0)
            if l + 1 < len(dims):
                act = y.astype(compute_dtype)      # keep inter-layer value narrow (less spill)
            else:
                o_refs[h][...] = y.astype(o_refs[h].dtype)


def fused_mlp_forward(features: jax.Array,
                      heads: Sequence[Tuple[jax.Array, jax.Array,
                                            Tuple[Tuple[int, int], ...], int]],
                      *,
                      compute_dtype=jnp.bfloat16,
                      batch_tile: int = 256) -> Tuple[jax.Array, ...]:
    """Run one or more MLP heads over `features` in a single pallas_call.

    heads: sequence of (w_stack (L, D_h, D_h), b_stack (L, 1, D_h),
                        layer_dims ((k_pad, n_pad), ...), true_out_dim).
    Returns one (B, true_out_dim) array per head.
    """
    assert features.ndim == 2, "features must be (batch, feature_dim)"
    B, F = features.shape
    F_pad = _round_up(F, _LANE)

    # Choose Bt so round_up(B, Bt) adds at most one partial tile of waste.
    n_tiles = -(-B // batch_tile)
    Bt = _round_up(-(-B // n_tiles), _SUBLANE)
    Bpad = n_tiles * Bt

    # Zero-pad batch rows and feature columns to the lane-dense input slab.
    x = jnp.zeros((Bpad, F_pad), features.dtype).at[:B, :F].set(features)

    inputs = [x]
    in_specs = [pl.BlockSpec((Bt, F_pad), lambda i: (i, 0))]
    layer_dims, out_pads, out_true = [], [], []
    for (w, b, dims, true_out) in heads:
        layer_dims.append(dims)
        out_pads.append(dims[-1][1])
        out_true.append(true_out)
        # index_map independent of the batch grid index -> stays resident in
        # VMEM across batch tiles; Buffered(1) drops the useless second buffer.
        in_specs.append(pl.BlockSpec(w.shape, lambda i: (0, 0, 0),
                                     pipeline_mode=pl.Buffered(1)))
        in_specs.append(pl.BlockSpec(b.shape, lambda i: (0, 0, 0),
                                     pipeline_mode=pl.Buffered(1)))
        inputs += [w, b]

    out_shape = [jax.ShapeDtypeStruct((Bpad, n), features.dtype) for n in out_pads]
    out_specs = [pl.BlockSpec((Bt, n), lambda i: (i, 0)) for n in out_pads]

    # Cost estimate from the per-layer sliced dims and actual itemsizes.
    flops = sum(2 * Bpad * k * n for dims in layer_dims for (k, n) in dims)
    bytes_accessed = (x.size * x.dtype.itemsize
                      + sum(w.size * w.dtype.itemsize + b.size * b.dtype.itemsize
                            for (w, b, _, _) in heads)
                      + sum(Bpad * n * features.dtype.itemsize for n in out_pads))

    # VMEM budget: single-buffered resident weights/biases + double-buffered
    # input/output tiles + headroom. Floor 32 MiB, cap 64 MiB (v7x physical).
    resident = sum(w.size * w.dtype.itemsize + b.size * b.dtype.itemsize
                   for (w, b, _, _) in heads)
    pipelined = 2 * (Bt * F_pad * x.dtype.itemsize
                     + sum(Bt * n * features.dtype.itemsize for n in out_pads))
    vmem_limit = min(max(resident + pipelined + (4 << 20), 32 << 20), 64 << 20)

    kernel = functools.partial(_fused_heads_kernel,
                               layer_dims=tuple(layer_dims),
                               compute_dtype=compute_dtype)

    outs = pl.pallas_call(
        kernel,
        grid=(Bpad // Bt,),
        in_specs=in_specs,
        out_specs=out_specs,
        out_shape=out_shape,
        compiler_params=pltpu.CompilerParams(
            dimension_semantics=("parallel",),        # shards batch tiles on v7x's 2 TCs
            vmem_limit_bytes=vmem_limit),
        cost_estimate=pl.CostEstimate(flops=flops, transcendentals=0,
                                      bytes_accessed=bytes_accessed),
    )(*inputs)

    if not isinstance(outs, (list, tuple)):
        outs = (outs,)
    return tuple(o[:B, :d] for o, d in zip(outs, out_true))


# ----------------------------------------------------------------------------
# Parameter construction (mirrors nn.Linear default init shapes; deterministic)
# ----------------------------------------------------------------------------
def build_network_params(key, input_dim: int, layers: List[int]):
    """Returns list of (w, b) with w: (in, out), b: (1, out). Empty list == Identity."""
    params = []
    last_dim = input_dim
    for layer_size in layers:
        key, kw, kb = jax.random.split(key, 3)
        bound = 1.0 / math.sqrt(last_dim)   # nn.Linear default uniform bound
        w = jax.random.uniform(kw, (last_dim, layer_size), jnp.float32,
                               minval=-bound, maxval=bound)
        b = jax.random.uniform(kb, (1, layer_size), jnp.float32,
                               minval=-bound, maxval=bound)
        params.append((w, b))
        last_dim = layer_size
    return params, key


def _build_head(params, feature_dim: int, compute_dtype):
    """Pad/stack one head: (w_stack, b_stack, layer_dims, true_out_dim) or None (Identity)."""
    if not params:
        return None
    dims = [feature_dim] + [w.shape[1] for (w, _) in params]
    pads = [_round_up(d, _LANE) for d in dims]
    D = max(pads)                                   # stack slab size for this head only
    ws, bs = [], []
    for (w, b) in params:
        din, dout = w.shape
        ws.append(jnp.zeros((D, D), compute_dtype).at[:din, :dout].set(
            w.astype(compute_dtype)))               # pre-cast weights -> no in-kernel casts
        bs.append(jnp.zeros((1, D), jnp.float32).at[:, :dout].set(b))   # f32 epilogue bias
    layer_dims = tuple((pads[i], pads[i + 1]) for i in range(len(params)))
    return jnp.stack(ws), jnp.stack(bs), layer_dims, dims[-1]


class CustomNetworkPallas:
    """JAX/Pallas equivalent of CustomNetwork (policy_net + value_net MLPs)."""

    def __init__(self, feature_dim: int,
                 actor_layers: Sequence[int] = (),
                 critic_layers: Sequence[int] = (),
                 seed: int = 0,
                 compute_dtype=jnp.bfloat16,   # bf16 MXU inputs, f32 accumulate/epilogue
                 batch_tile: int = 256):
        actor_layers = list(actor_layers)
        critic_layers = list(critic_layers)
        key = jax.random.PRNGKey(seed)
        self.policy_params, key = build_network_params(key, feature_dim, actor_layers)
        self.value_params, key = build_network_params(key, feature_dim, critic_layers)
        self.latent_dim_pi = actor_layers[-1] if actor_layers else feature_dim
        self.latent_dim_vf = critic_layers[-1] if critic_layers else feature_dim
        self.feature_dim = feature_dim
        self.compute_dtype = compute_dtype
        self.batch_tile = batch_tile
        self._pi_head = _build_head(self.policy_params, feature_dim, compute_dtype)
        self._vf_head = _build_head(self.value_params, feature_dim, compute_dtype)

    # -- forward passes -------------------------------------------------------
    def forward(self, features: jax.Array) -> Tuple[jax.Array, jax.Array]:
        heads, names = [], []
        if self._pi_head is not None:
            heads.append(self._pi_head)
            names.append("pi")
        if self._vf_head is not None:
            heads.append(self._vf_head)
            names.append("vf")
        outs = {}
        if heads:   # both heads fused into ONE pallas_call
            results = fused_mlp_forward(features, heads,
                                        compute_dtype=self.compute_dtype,
                                        batch_tile=self.batch_tile)
            outs = dict(zip(names, results))
        return outs.get("pi", features), outs.get("vf", features)

    def forward_actor(self, features: jax.Array) -> jax.Array:
        if self._pi_head is None:          # nn.Identity()
            return features
        (out,) = fused_mlp_forward(features, [self._pi_head],
                                   compute_dtype=self.compute_dtype,
                                   batch_tile=self.batch_tile)
        return out

    def forward_critic(self, features: jax.Array) -> jax.Array:
        if self._vf_head is None:          # nn.Identity()
            return features
        (out,) = fused_mlp_forward(features, [self._vf_head],
                                   compute_dtype=self.compute_dtype,
                                   batch_tile=self.batch_tile)
        return out


# ----------------------------------------------------------------------------
# Pure-JAX reference for correctness checks
# ----------------------------------------------------------------------------
def _ref_net(features, params):
    h = features
    for w, b in params:
        h = jnp.maximum(h @ w + b, 0.0)
    return h


if __name__ == "__main__":
    batch = 2
    feature_dim = 32
    actor_layers = [64, 32]
    critic_layers = [64]

    key = jax.random.PRNGKey(0)
    features = jax.random.normal(key, (batch, feature_dim), jnp.float32)

    # 1) Default config: bf16 MXU inputs, f32 accumulate/epilogue (loose tolerance;
    #    bf16 operand rounding changes numerics vs the f32 PyTorch reference).
    net = CustomNetworkPallas(feature_dim, actor_layers, critic_layers, seed=0)
    fwd = jax.jit(net.forward)
    latent_pi, latent_vf = fwd(features)
    latent_pi = jax.block_until_ready(latent_pi)
    latent_vf = jax.block_until_ready(latent_vf)

    ref_pi = _ref_net(features, net.policy_params)
    ref_vf = _ref_net(features, net.value_params)
    assert latent_pi.shape == (batch, net.latent_dim_pi)
    assert latent_vf.shape == (batch, net.latent_dim_vf)
    assert jnp.allclose(latent_pi, ref_pi, atol=5e-2, rtol=5e-2)
    assert jnp.allclose(latent_vf, ref_vf, atol=5e-2, rtol=5e-2)

    # 2) f32 config matches the PyTorch-style reference tightly.
    net32 = CustomNetworkPallas(feature_dim, actor_layers, critic_layers, seed=0,
                                compute_dtype=jnp.float32)
    pi32, vf32 = jax.jit(net32.forward)(features)
    pi32 = jax.block_until_ready(pi32)
    vf32 = jax.block_until_ready(vf32)
    assert jnp.allclose(pi32, ref_pi, atol=1e-4, rtol=1e-4)
    assert jnp.allclose(vf32, ref_vf, atol=1e-4, rtol=1e-4)

    # 3) Heterogeneous layer widths (exercises per-layer static slicing) +
    #    Identity critic head (critic_layers=[]) + single-head fused path.
    net2 = CustomNetworkPallas(feature_dim, actor_layers=[160, 48], critic_layers=[],
                               seed=1, compute_dtype=jnp.float32)
    pi2, vf2 = jax.jit(net2.forward)(features)
    pi2 = jax.block_until_ready(pi2)
    vf2 = jax.block_until_ready(vf2)
    assert vf2.shape == (batch, feature_dim) and jnp.allclose(vf2, features)
    assert pi2.shape == (batch, 48)
    assert jnp.allclose(pi2, _ref_net(features, net2.policy_params), atol=1e-3, rtol=1e-3)

    print("KERNEL_OK")
</pallas_src>

<mosaic_0001>
module attributes {stable_mosaic.version = 11 : i64} {
  func.func @_fused_heads_kernel(%arg0: i32, %arg1: memref<8x128xf32, #tpu.memory_space<vmem>>, %arg2: memref<2x128x128xbf16, #tpu.memory_space<vmem>>, %arg3: memref<2x1x128xf32, #tpu.memory_space<vmem>>, %arg4: memref<1x128x128xbf16, #tpu.memory_space<vmem>>, %arg5: memref<1x1x128xf32, #tpu.memory_space<vmem>>, %arg6: memref<8x128xf32, #tpu.memory_space<vmem>>, %arg7: memref<8x128xf32, #tpu.memory_space<vmem>>) attributes {dimension_semantics = [#tpu.dimension_semantics<parallel>], iteration_bounds = array<i64: 1>, scalar_prefetch = 0 : i64, scratch_operands = 0 : i64, tpu.core_type = #tpu.core_type<tc>, window_params = [{transform_indices = @transform_0, window_bounds = array<i64: 8, 128>}, {pipeline_mode = #tpu.pipeline_mode<synchronous>, transform_indices = @transform_1, window_bounds = array<i64: 2, 128, 128>}, {pipeline_mode = #tpu.pipeline_mode<synchronous>, transform_indices = @transform_2, window_bounds = array<i64: 2, 1, 128>}, {pipeline_mode = #tpu.pipeline_mode<synchronous>, transform_indices = @transform_3, window_bounds = array<i64: 1, 128, 128>}, {pipeline_mode = #tpu.pipeline_mode<synchronous>, transform_indices = @transform_4, window_bounds = array<i64: 1, 1, 128>}, {transform_indices = @transform_5, window_bounds = array<i64: 8, 128>}, {transform_indices = @transform_6, window_bounds = array<i64: 8, 128>}]} {
    %c0 = arith.constant 0 : index
    %c0_0 = arith.constant 0 : index
    %0 = vector.load %arg1[%c0, %c0_0] : memref<8x128xf32, #tpu.memory_space<vmem>>, vector<8x128xf32>
    %1 = arith.truncf %0 : vector<8x128xf32> to vector<8x128xbf16>
    %c0_1 = arith.constant 0 : index
    %c0_2 = arith.constant 0 : index
    %c0_3 = arith.constant 0 : index
    %2 = vector.load %arg2[%c0_1, %c0_2, %c0_3] : memref<2x128x128xbf16, #tpu.memory_space<vmem>>, vector<1x128x128xbf16>
    %3 = vector.shape_cast %2 : vector<1x128x128xbf16> to vector<128x128xbf16>
    %cst = arith.constant dense<0.000000e+00> : vector<8x128xf32>
    %4 = tpu.matmul %1, %3, %cst {dimension_numbers = #tpu.dot_dimension_numbers<[1], [0], [0], [1], [0, 0, 1, 1], [], []>} : vector<8x128xbf16>, vector<128x128xbf16>, vector<8x128xf32> -> vector<8x128xf32>
    %c0_4 = arith.constant 0 : index
    %c0_5 = arith.constant 0 : index
    %c0_6 = arith.constant 0 : index
    %5 = vector.load %arg3[%c0_4, %c0_5, %c0_6] : memref<2x1x128xf32, #tpu.memory_space<vmem>>, vector<1x1x128xf32>
    %6 = vector.shape_cast %5 : vector<1x1x128xf32> to vector<1x128xf32>
    %7 = vector.broadcast %6 : vector<1x128xf32> to vector<8x128xf32>
    %8 = arith.addf %4, %7 : vector<8x128xf32>
    %cst_7 = arith.constant 0.000000e+00 : f32
    %9 = vector.broadcast %cst_7 : f32 to vector<8x128xf32>
    %10 = arith.maximumf %8, %9 : vector<8x128xf32>
    %11 = arith.truncf %10 : vector<8x128xf32> to vector<8x128xbf16>
    %c1 = arith.constant 1 : index
    %c0_8 = arith.constant 0 : index
    %c0_9 = arith.constant 0 : index
    %12 = vector.load %arg2[%c1, %c0_8, %c0_9] : memref<2x128x128xbf16, #tpu.memory_space<vmem>>, vector<1x128x128xbf16>
    %13 = vector.shape_cast %12 : vector<1x128x128xbf16> to vector<128x128xbf16>
    %cst_10 = arith.constant dense<0.000000e+00> : vector<8x128xf32>
    %14 = tpu.matmul %11, %13, %cst_10 {dimension_numbers = #tpu.dot_dimension_numbers<[1], [0], [0], [1], [0, 0, 1, 1], [], []>} : vector<8x128xbf16>, vector<128x128xbf16>, vector<8x128xf32> -> vector<8x128xf32>
    %c1_11 = arith.constant 1 : index
    %c0_12 = arith.constant 0 : index
    %c0_13 = arith.constant 0 : index
    %15 = vector.load %arg3[%c1_11, %c0_12, %c0_13] : memref<2x1x128xf32, #tpu.memory_space<vmem>>, vector<1x1x128xf32>
    %16 = vector.shape_cast %15 : vector<1x1x128xf32> to vector<1x128xf32>
    %17 = vector.broadcast %16 : vector<1x128xf32> to vector<8x128xf32>
    %18 = arith.addf %14, %17 : vector<8x128xf32>
    %cst_14 = arith.constant 0.000000e+00 : f32
    %19 = vector.broadcast %cst_14 : f32 to vector<8x128xf32>
    %20 = arith.maximumf %18, %19 : vector<8x128xf32>
    %c0_15 = arith.constant 0 : index
    %c0_16 = arith.constant 0 : index
    %21 = vector.load %arg6[%c0_15, %c0_16] : memref<8x128xf32, #tpu.memory_space<vmem>>, vector<8x128xf32>
    tpu.vector_store %arg6[%c0_15, %c0_16], %20 {strides = array<i32>} : memref<8x128xf32, #tpu.memory_space<vmem>>, vector<8x128xf32>,
    %c0_17 = arith.constant 0 : index
    %c0_18 = arith.constant 0 : index
    %c0_19 = arith.constant 0 : index
    %22 = vector.load %arg4[%c0_17, %c0_18, %c0_19] : memref<1x128x128xbf16, #tpu.memory_space<vmem>>, vector<1x128x128xbf16>
    %23 = vector.shape_cast %22 : vector<1x128x128xbf16> to vector<128x128xbf16>
    %cst_20 = arith.constant dense<0.000000e+00> : vector<8x128xf32>
    %24 = tpu.matmul %1, %23, %cst_20 {dimension_numbers = #tpu.dot_dimension_numbers<[1], [0], [0], [1], [0, 0, 1, 1], [], []>} : vector<8x128xbf16>, vector<128x128xbf16>, vector<8x128xf32> -> vector<8x128xf32>
    %c0_21 = arith.constant 0 : index
    %c0_22 = arith.constant 0 : index
    %c0_23 = arith.constant 0 : index
    %25 = vector.load %arg5[%c0_21, %c0_22, %c0_23] : memref<1x1x128xf32, #tpu.memory_space<vmem>>, vector<1x1x128xf32>
    %26 = vector.shape_cast %25 : vector<1x1x128xf32> to vector<1x128xf32>
    %27 = vector.broadcast %26 : vector<1x128xf32> to vector<8x128xf32>
    %28 = arith.addf %24, %27 : vector<8x128xf32>
    %cst_24 = arith.constant 0.000000e+00 : f32
    %29 = vector.broadcast %cst_24 : f32 to vector<8x128xf32>
    %30 = arith.maximumf %28, %29 : vector<8x128xf32>
    %c0_25 = arith.constant 0 : index
    %c0_26 = arith.constant 0 : index
    %31 = vector.load %arg7[%c0_25, %c0_26] : memref<8x128xf32, #tpu.memory_space<vmem>>, vector<8x128xf32>
    tpu.vector_store %arg7[%c0_25, %c0_26], %30 {strides = array<i32>} : memref<8x128xf32, #tpu.memory_space<vmem>>, vector<8x128xf32>,
    return
  }
  func.func @transform_0(%arg0: i32) -> (i32, i32) {
    %c0_i32 = arith.constant 0 : i32
    %c0_i32_0 = arith.constant 0 : i32
    return %arg0, %c0_i32 : i32, i32
  }
  func.func @transform_1(%arg0: i32) -> (i32, i32, i32) {
    %c0_i32 = arith.constant 0 : i32
    %c0_i32_0 = arith.constant 0 : i32
    %c0_i32_1 = arith.constant 0 : i32
    %c0_i32_2 = arith.constant 0 : i32
    return %c0_i32, %c0_i32_0, %c0_i32_1 : i32, i32, i32
  }
  func.func @transform_2(%arg0: i32) -> (i32, i32, i32) {
    %c0_i32 = arith.constant 0 : i32
    %c0_i32_0 = arith.constant 0 : i32
    %c0_i32_1 = arith.constant 0 : i32
    %c0_i32_2 = arith.constant 0 : i32
    return %c0_i32, %c0_i32_0, %c0_i32_1 : i32, i32, i32
  }
  func.func @transform_3(%arg0: i32) -> (i32, i32, i32) {
    %c0_i32 = arith.constant 0 : i32
    %c0_i32_0 = arith.constant 0 : i32
    %c0_i32_1 = arith.constant 0 : i32
    %c0_i32_2 = arith.constant 0 : i32
    return %c0_i32, %c0_i32_0, %c0_i32_1 : i32, i32, i32
  }
  func.func @transform_4(%arg0: i32) -> (i32, i32, i32) {
    %c0_i32 = arith.constant 0 : i32
    %c0_i32_0 = arith.constant 0 : i32
    %c0_i32_1 = arith.constant 0 : i32
    %c0_i32_2 = arith.constant 0 : i32
    return %c0_i32, %c0_i32_0, %c0_i32_1 : i32, i32, i32
  }
  func.func @transform_5(%arg0: i32) -> (i32, i32) {
    %c0_i32 = arith.constant 0 : i32
    %c0_i32_0 = arith.constant 0 : i32
    return %arg0, %c0_i32 : i32, i32
  }
  func.func @transform_6(%arg0: i32) -> (i32, i32) {
    %c0_i32 = arith.constant 0 : i32
    %c0_i32_0 = arith.constant 0 : i32
    return %arg0, %c0_i32 : i32, i32
  }
}

</mosaic_0001>

<llo_original>
// kernel: forward.1
$region0: #{forward.1}
  #allocation0 [shape = 'u32[]', space=smem, size = 0x4, offset = 0x4, fixed_abs, tag = 'smem constant byte address 0x4 - core index']
  #allocation1 [shape = 'u32[144,128]{1,0:T(1,128)}', space=vmem, size = 0x12000, scoped, tag = 'internal scratch']
  %s0 = inlined_call_operand.vmem [shape: f32[8,128], index: 0, kind: input, shape index: {}]
  %s1 = inlined_call_operand.hbm [shape: bf16[2,128,128], index: 1, kind: input, shape index: {}]
  %s2 = inlined_call_operand.vmem [shape: f32[2,1,128], index: 2, kind: input, shape index: {}]
  %s3 = inlined_call_operand.hbm [shape: bf16[1,128,128], index: 3, kind: input, shape index: {}]
  %s4 = inlined_call_operand.vmem [shape: f32[1,1,128], index: 4, kind: input, shape index: {}]
  %s5 = inlined_call_operand.vmem [shape: f32[8,128], index: 5, kind: output, shape index: {0}]
  %s6 = inlined_call_operand.vmem [shape: f32[8,128], index: 6, kind: output, shape index: {1}]
  %7 = xla_tuple %s5, %s6
  %s8 = sld [smem:[#allocation0]]
  $region46: #{forward.1} parent=0
    _
  %s10 = ssub.s32 1, %s8
  %s11 = scalar_select 0, %s10, %s8
  $region1: #{forward.1} parent=0
    #allocation2 [shape = 'u8[65536]{0}', space=vmem, size = 0x10000, scoped, tag = 'input window, operand 1, single buffered']
    #allocation3 [shape = 's32[1]{0}', space=sflag, size = 0x4, scoped, tag = 'scoped memory for forward.1']
    #allocation4 [shape = 'u8[32768]{0}', space=vmem, size = 0x8000, scoped, tag = 'input window, operand 3, single buffered']
    #allocation5 [shape = 's32[1]{0}', space=sflag, size = 0x4, scoped, tag = 'scoped memory for forward.1']
    %12 = vsyncpa [#allocation3], 0
    %13 = vsyncpa [#allocation5], 0
    // Predicated region
    $region2: #{forward.1} parent=1 // pred_check
      _
    $region3: #{forward.1} parent=1 // pred_check_branch
      %15 = sbr.rel (0) target = $region5
    $region4: #{forward.1} parent=1 // pred_region
      _
    $region5: #{forward.1} parent=1 // pred_fallthru
      _
    // Predicated region
    $region6: #{forward.1} parent=1 // pred_check
      _
    $region7: #{forward.1} parent=1 // pred_check_branch
      %17 = sbr.rel (0) target = $region9
    $region8: #{forward.1} parent=1 // pred_region
      %s19 = ssub.s32 2048, 2048
      %20 = vsyncadd [#allocation3], %s19
      %s21 = sshll.u32 [#allocation2], 4
      %s22 = int_to_ptr.vmem [resolvable:$true] %s21
      %27 = dma.hbm_to_vmem [thread:$0]  %s1, 2048, %s22, [#allocation3], 64, 64, 4
    $region9: #{forward.1} parent=1 // pred_fallthru
      _
    // Predicated region
    $region10: #{forward.1} parent=1 // pred_check
      _
    $region11: #{forward.1} parent=1 // pred_check_branch
      %29 = sbr.rel (0) target = $region13
    $region12: #{forward.1} parent=1 // pred_region
      _
    $region13: #{forward.1} parent=1 // pred_fallthru
      _
    // Predicated region
    $region14: #{forward.1} parent=1 // pred_check
      _
    $region15: #{forward.1} parent=1 // pred_check_branch
      %31 = sbr.rel (0) target = $region17
    $region16: #{forward.1} parent=1 // pred_region
      %s33 = ssub.s32 1024, 1024
      %34 = vsyncadd [#allocation5], %s33
      %s35 = sshll.u32 [#allocation4], 4
      %s36 = int_to_ptr.vmem [resolvable:$true] %s35
      %41 = dma.hbm_to_vmem [thread:$0]  %s3, 1024, %s36, [#allocation5], 64, 64, 4
    $region17: #{forward.1} parent=1 // pred_fallthru
      _
    // Predicated region
    $region18: #{forward.1} parent=1 // pred_check
      _
    $region19: #{forward.1} parent=1 // pred_check_branch
      %43 = sbr.rel (0) target = $region21
    $region20: #{forward.1} parent=1 // pred_region
      _
    $region21: #{forward.1} parent=1 // pred_fallthru
      _
    // Predicated region
    $region22: #{forward.1} parent=1 // pred_check
      _
    $region23: #{forward.1} parent=1 // pred_check_branch
      %45 = sbr.rel (0) target = $region25
    $region24: #{forward.1} parent=1 // pred_region
      %46 = dma.done [#allocation3], 2048
    $region25: #{forward.1} parent=1 // pred_fallthru
      _
    // Predicated region
    $region26: #{forward.1} parent=1 // pred_check
      _
    $region27: #{forward.1} parent=1 // pred_check_branch
      %48 = sbr.rel (0) target = $region29
    $region28: #{forward.1} parent=1 // pred_region
      %49 = dma.done [#allocation5], 1024
    $region29: #{forward.1} parent=1 // pred_fallthru
      _
    %v51 = vld [vmem:[%s0] sm:$0xff]
    %v52 = vpack.c.bf16 %v51, %v51
    %v53 = vld [vmem:[#allocation2] sm:$0xf]
    %v54 = vld [vmem:[#allocation2 + $0x4] sm:$0xf]
    %v55 = vld [vmem:[#allocation2 + $0x8] sm:$0xf]
    %v56 = vld [vmem:[#allocation2 + $0xc] sm:$0xf]
    %v57 = vld [vmem:[#allocation2 + $0x10] sm:$0xf]
    %v58 = vld [vmem:[#allocation2 + $0x14] sm:$0xf]
    %v59 = vld [vmem:[#allocation2 + $0x18] sm:$0xf]
    %v60 = vld [vmem:[#allocation2 + $0x1c] sm:$0xf]
    %v61 = vld [vmem:[#allocation2 + $0x20] sm:$0xf]
    %v62 = vld [vmem:[#allocation2 + $0x24] sm:$0xf]
    %v63 = vld [vmem:[#allocation2 + $0x28] sm:$0xf]
    %v64 = vld [vmem:[#allocation2 + $0x2c] sm:$0xf]
    %v65 = vld [vmem:[#allocation2 + $0x30] sm:$0xf]
    %v66 = vld [vmem:[#allocation2 + $0x34] sm:$0xf]
    %v67 = vld [vmem:[#allocation2 + $0x38] sm:$0xf]
    %v68 = vld [vmem:[#allocation2 + $0x3c] sm:$0xf]
    %v69 = vld [vmem:[%s2] sm:$0x1]
    %v71 = vlaneseq
    %v72 = vshrl.u32 %v71, 7
    %v73 = vsub.s32 0, %v72
    %v74 = vrot.slane %v69, %v73
    %v92 = vunpack.c.l.b16 %v53
    %v93 = vunpack.c.l.b16 %v54
    %v94 = vunpack.c.l.b16 %v55
    %v95 = vunpack.c.l.b16 %v56
    %v96 = vunpack.c.l.b16 %v57
    %v97 = vunpack.c.l.b16 %v58
    %v98 = vunpack.c.l.b16 %v59
    %v99 = vunpack.c.l.b16 %v60
    %v100 = vunpack.c.l.b16 %v61
    %v101 = vunpack.c.l.b16 %v62
    %v102 = vunpack.c.l.b16 %v63
    %v103 = vunpack.c.l.b16 %v64
    %v104 = vunpack.c.l.b16 %v65
    %v105 = vunpack.c.l.b16 %v66
    %v106 = vunpack.c.l.b16 %v67
    %v107 = vunpack.c.l.b16 %v68
    %v108 = vpack.c.b16 %v93, %v92
    %v109 = vpack.c.b16 %v95, %v94
    %v110 = vpack.c.b16 %v97, %v96
    %v111 = vpack.c.b16 %v99, %v98
    %v112 = vpack.c.b16 %v101, %v100
    %v113 = vpack.c.b16 %v103, %v102
    %v114 = vpack.c.b16 %v105, %v104
    %v115 = vpack.c.b16 %v107, %v106
    %124 = vmatprep.subr.bf16.mxu0 0
    %125 = vmatpush1.bf16.msra.mxu0 %v108
    %126 = vmatprep.subr.bf16.mxu0 0
    %127 = vmatpush1.bf16.msra.mxu0 %v109
    %128 = vmatprep.subr.bf16.mxu0 0
    %129 = vmatpush1.bf16.msra.mxu0 %v110
    %130 = vmatprep.subr.bf16.mxu0 0
    %131 = vmatpush1.bf16.msra.mxu0 %v111
    %132 = vmatprep.subr.bf16.mxu0 0
    %133 = vmatpush1.bf16.msra.mxu0 %v112
    %134 = vmatprep.subr.bf16.mxu0 0
    %135 = vmatpush1.bf16.msra.mxu0 %v113
    %136 = vmatprep.subr.bf16.mxu0 0
    %137 = vmatpush1.bf16.msra.mxu0 %v114
    %138 = vmatprep.subr.bf16.mxu0 0
    %139 = vmatpush1.bf16.msra.mxu0 %v115
    %140 = vmatprep.subr.bf16.mxu0 0
    %141 = vmatpush1.bf16.msra.mxu0 0
    %142 = vmatprep.subr.bf16.mxu0 0
    %143 = vmatpush1.bf16.msra.mxu0 0
    %144 = vmatprep.subr.bf16.mxu0 0
    %145 = vmatpush1.bf16.msra.mxu0 0
    %146 = vmatprep.subr.bf16.mxu0 0
    %147 = vmatpush1.bf16.msra.mxu0 0
    %148 = vmatprep.subr.bf16.mxu0 0
    %149 = vmatpush1.bf16.msra.mxu0 0
    %150 = vmatprep.subr.bf16.mxu0 0
    %151 = vmatpush1.bf16.msra.mxu0 0
    %152 = vmatprep.subr.bf16.mxu0 0
    %153 = vmatpush1.bf16.msra.mxu0 0
    %154 = vmatprep.subr.bf16.mxu0 0
    %155 = vmatpush1.bf16.msra.mxu0 0
    %156 = vmatprep.mubr.bf16.mxu0 0
    %157 = vmatmul.mubr.bf16.gmra.mrb[0].mxu0 %v52
    %v158 = vpop.f32.mrb[0].mxu0
    %v159 = vadd.f32 %v74, %v158
    %v160 = vpop.f32.mrb[0].mxu0
    %v161 = vpop.f32.mrb[0].mxu0
    %v162 = vpop.f32.mrb[0].mxu0
    %163 = vdwg.mxu0
    %v164 = vmax.f32 %v159, 0.0
    %v165 = vpack.c.bf16 %v164, %v164
    %s166 = scalar_lea.vmem [#allocation2], 64
    %v167 = vld [vmem:[%s166] sm:$0xf]
    %v168 = vld [vmem:[%s166 + $0x4] sm:$0xf]
    %v169 = vld [vmem:[%s166 + $0x8] sm:$0xf]
    %v170 = vld [vmem:[%s166 + $0xc] sm:$0xf]
    %v171 = vld [vmem:[%s166 + $0x10] sm:$0xf]
    %v172 = vld [vmem:[%s166 + $0x14] sm:$0xf]
    %v173 = vld [vmem:[%s166 + $0x18] sm:$0xf]
    %v174 = vld [vmem:[%s166 + $0x1c] sm:$0xf]
    %v175 = vld [vmem:[%s166 + $0x20] sm:$0xf]
    %v176 = vld [vmem:[%s166 + $0x24] sm:$0xf]
    %v177 = vld [vmem:[%s166 + $0x28] sm:$0xf]
    %v178 = vld [vmem:[%s166 + $0x2c] sm:$0xf]
    %v179 = vld [vmem:[%s166 + $0x30] sm:$0xf]
    %v180 = vld [vmem:[%s166 + $0x34] sm:$0xf]
    %v181 = vld [vmem:[%s166 + $0x38] sm:$0xf]
    %v182 = vld [vmem:[%s166 + $0x3c] sm:$0xf]
    %s183 = scalar_lea.vmem %s2, 1
    %v184 = vld [vmem:[%s183] sm:$0x1]
    %v186 = vlaneseq
    %v187 = vshrl.u32 %v186, 7
    %v188 = vsub.s32 0, %v187
    %v189 = vrot.slane %v184, %v188
    %v207 = vunpack.c.l.b16 %v167
    %v208 = vunpack.c.l.b16 %v168
    %v209 = vunpack.c.l.b16 %v169
    %v210 = vunpack.c.l.b16 %v170
    %v211 = vunpack.c.l.b16 %v171
    %v212 = vunpack.c.l.b16 %v172
    %v213 = vunpack.c.l.b16 %v173
    %v214 = vunpack.c.l.b16 %v174
    %v215 = vunpack.c.l.b16 %v175
    %v216 = vunpack.c.l.b16 %v176
    %v217 = vunpack.c.l.b16 %v177
    %v218 = vunpack.c.l.b16 %v178
    %v219 = vunpack.c.l.b16 %v179
    %v220 = vunpack.c.l.b16 %v180
    %v221 = vunpack.c.l.b16 %v181
    %v222 = vunpack.c.l.b16 %v182
    %v223 = vpack.c.b16 %v208, %v207
    %v224 = vpack.c.b16 %v210, %v209
    %v225 = vpack.c.b16 %v212, %v211
    %v226 = vpack.c.b16 %v214, %v213
    %v227 = vpack.c.b16 %v216, %v215
    %v228 = vpack.c.b16 %v218, %v217
    %v229 = vpack.c.b16 %v220, %v219
    %v230 = vpack.c.b16 %v222, %v221
    %239 = vmatprep.subr.bf16.mxu0 0
    %240 = vmatpush1.bf16.msra.mxu0 %v223
    %241 = vmatprep.subr.bf16.mxu0 0
    %242 = vmatpush1.bf16.msra.mxu0 %v224
    %243 = vmatprep.subr.bf16.mxu0 0
    %244 = vmatpush1.bf16.msra.mxu0 %v225
    %245 = vmatprep.subr.bf16.mxu0 0
    %246 = vmatpush1.bf16.msra.mxu0 %v226
    %247 = vmatprep.subr.bf16.mxu0 0
    %248 = vmatpush1.bf16.msra.mxu0 %v227
    %249 = vmatprep.subr.bf16.mxu0 0
    %250 = vmatpush1.bf16.msra.mxu0 %v228
    %251 = vmatprep.subr.bf16.mxu0 0
    %252 = vmatpush1.bf16.msra.mxu0 %v229
    %253 = vmatprep.subr.bf16.mxu0 0
    %254 = vmatpush1.bf16.msra.mxu0 %v230
    %255 = vmatprep.subr.bf16.mxu0 0
    %256 = vmatpush1.bf16.msra.mxu0 0
    %257 = vmatprep.subr.bf16.mxu0 0
    %258 = vmatpush1.bf16.msra.mxu0 0
    %259 = vmatprep.subr.bf16.mxu0 0
    %260 = vmatpush1.bf16.msra.mxu0 0
    %261 = vmatprep.subr.bf16.mxu0 0
    %262 = vmatpush1.bf16.msra.mxu0 0
    %263 = vmatprep.subr.bf16.mxu0 0
    %264 = vmatpush1.bf16.msra.mxu0 0
    %265 = vmatprep.subr.bf16.mxu0 0
    %266 = vmatpush1.bf16.msra.mxu0 0
    %267 = vmatprep.subr.bf16.mxu0 0
    %268 = vmatpush1.bf16.msra.mxu0 0
    %269 = vmatprep.subr.bf16.mxu0 0
    %270 = vmatpush1.bf16.msra.mxu0 0
    %271 = vmatprep.mubr.bf16.mxu0 0
    %272 = vmatmul.mubr.bf16.gmra.mrb[0].mxu0 %v165
    %v273 = vpop.f32.mrb[0].mxu0
    %v274 = vadd.f32 %v189, %v273
    %v275 = vpop.f32.mrb[0].mxu0
    %v276 = vpop.f32.mrb[0].mxu0
    %v277 = vpop.f32.mrb[0].mxu0
    %278 = vdwg.mxu0
    %v279 = vmax.f32 %v274, 0.0
    %280 = vst [vmem:[%s5] sm:$0xff] %v279
    %v281 = vld [vmem:[#allocation4] sm:$0xf]
    %v282 = vld [vmem:[#allocation4 + $0x4] sm:$0xf]
    %v283 = vld [vmem:[#allocation4 + $0x8] sm:$0xf]
    %v284 = vld [vmem:[#allocation4 + $0xc] sm:$0xf]
    %v285 = vld [vmem:[#allocation4 + $0x10] sm:$0xf]
    %v286 = vld [vmem:[#allocation4 + $0x14] sm:$0xf]
    %v287 = vld [vmem:[#allocation4 + $0x18] sm:$0xf]
    %v288 = vld [vmem:[#allocation4 + $0x1c] sm:$0xf]
    %v289 = vld [vmem:[#allocation4 + $0x20] sm:$0xf]
    %v290 = vld [vmem:[#allocation4 + $0x24] sm:$0xf]
    %v291 = vld [vmem:[#allocation4 + $0x28] sm:$0xf]
    %v292 = vld [vmem:[#allocation4 + $0x2c] sm:$0xf]
    %v293 = vld [vmem:[#allocation4 + $0x30] sm:$0xf]
    %v294 = vld [vmem:[#allocation4 + $0x34] sm:$0xf]
    %v295 = vld [vmem:[#allocation4 + $0x38] sm:$0xf]
    %v296 = vld [vmem:[#allocation4 + $0x3c] sm:$0xf]
    %v297 = vld [vmem:[%s4] sm:$0x1]
    %v299 = vlaneseq
    %v300 = vshrl.u32 %v299, 7
    %v301 = vsub.s32 0, %v300
    %v302 = vrot.slane %v297, %v301
    %v320 = vunpack.c.l.b16 %v281
    %v321 = vunpack.c.l.b16 %v282
    %v322 = vunpack.c.l.b16 %v283
    %v323 = vunpack.c.l.b16 %v284
    %v324 = vunpack.c.l.b16 %v285
    %v325 = vunpack.c.l.b16 %v286
    %v326 = vunpack.c.l.b16 %v287
    %v327 = vunpack.c.l.b16 %v288
    %v328 = vunpack.c.l.b16 %v289
    %v329 = vunpack.c.l.b16 %v290
    %v330 = vunpack.c.l.b16 %v291
    %v331 = vunpack.c.l.b16 %v292
    %v332 = vunpack.c.l.b16 %v293
    %v333 = vunpack.c.l.b16 %v294
    %v334 = vunpack.c.l.b16 %v295
    %v335 = vunpack.c.l.b16 %v296
    %v336 = vpack.c.b16 %v321, %v320
    %v337 = vpack.c.b16 %v323, %v322
    %v338 = vpack.c.b16 %v325, %v324
    %v339 = vpack.c.b16 %v327, %v326
    %v340 = vpack.c.b16 %v329, %v328
    %v341 = vpack.c.b16 %v331, %v330
    %v342 = vpack.c.b16 %v333, %v332
    %v343 = vpack.c.b16 %v335, %v334
    %352 = vmatprep.subr.bf16.mxu0 0
    %353 = vmatpush1.bf16.msra.mxu0 %v336
    %354 = vmatprep.subr.bf16.mxu0 0
    %355 = vmatpush1.bf16.msra.mxu0 %v337
    %356 = vmatprep.subr.bf16.mxu0 0
    %357 = vmatpush1.bf16.msra.mxu0 %v338
    %358 = vmatprep.subr.bf16.mxu0 0
    %359 = vmatpush1.bf16.msra.mxu0 %v339
    %360 = vmatprep.subr.bf16.mxu0 0
    %361 = vmatpush1.bf16.msra.mxu0 %v340
    %362 = vmatprep.subr.bf16.mxu0 0
    %363 = vmatpush1.bf16.msra.mxu0 %v341
    %364 = vmatprep.subr.bf16.mxu0 0
    %365 = vmatpush1.bf16.msra.mxu0 %v342
    %366 = vmatprep.subr.bf16.mxu0 0
    %367 = vmatpush1.bf16.msra.mxu0 %v343
    %368 = vmatprep.subr.bf16.mxu0 0
    %369 = vmatpush1.bf16.msra.mxu0 0
    %370 = vmatprep.subr.bf16.mxu0 0
    %371 = vmatpush1.bf16.msra.mxu0 0
    %372 = vmatprep.subr.bf16.mxu0 0
    %373 = vmatpush1.bf16.msra.mxu0 0
    %374 = vmatprep.subr.bf16.mxu0 0
    %375 = vmatpush1.bf16.msra.mxu0 0
    %376 = vmatprep.subr.bf16.mxu0 0
    %377 = vmatpush1.bf16.msra.mxu0 0
    %378 = vmatprep.subr.bf16.mxu0 0
    %379 = vmatpush1.bf16.msra.mxu0 0
    %380 = vmatprep.subr.bf16.mxu0 0
    %381 = vmatpush1.bf16.msra.mxu0 0
    %382 = vmatprep.subr.bf16.mxu0 0
    %383 = vmatpush1.bf16.msra.mxu0 0
    %384 = vmatprep.mubr.bf16.mxu0 0
    %385 = vmatmul.mubr.bf16.gmra.mrb[0].mxu0 %v52
    %v386 = vpop.f32.mrb[0].mxu0
    %v387 = vadd.f32 %v302, %v386
    %v388 = vpop.f32.mrb[0].mxu0
    %v389 = vpop.f32.mrb[0].mxu0
    %v390 = vpop.f32.mrb[0].mxu0
    %391 = vdwg.mxu0
    %v392 = vmax.f32 %v387, 0.0
    %393 = vst [vmem:[%s6] sm:$0xff] %v392
    // Predicated region
    $region30: #{forward.1} parent=1 // pred_check
      _
    $region31: #{forward.1} parent=1 // pred_check_branch
      %395 = sbr.rel (0) target = $region33
    $region32: #{forward.1} parent=1 // pred_region
      _
    $region33: #{forward.1} parent=1 // pred_fallthru
      _
    // Predicated region
    $region34: #{forward.1} parent=1 // pred_check
      _
    $region35: #{forward.1} parent=1 // pred_check_branch
      %397 = sbr.rel (0) target = $region37
    $region36: #{forward.1} parent=1 // pred_region
      _
    $region37: #{forward.1} parent=1 // pred_fallthru
      _
    // Predicated region
    $region38: #{forward.1} parent=1 // pred_check
      _
    $region39: #{forward.1} parent=1 // pred_check_branch
      %399 = sbr.rel (0) target = $region41
    $region40: #{forward.1} parent=1 // pred_region
      _
    $region41: #{forward.1} parent=1 // pred_fallthru
      _
    // Predicated region
    $region42: #{forward.1} parent=1 // pred_check
      _
    $region43: #{forward.1} parent=1 // pred_check_branch
      %401 = sbr.rel (0) target = $region45
    $region44: #{forward.1} parent=1 // pred_region
      _
    $region45: #{forward.1} parent=1 // pred_fallthru
      _
    %402 = vsyncpa [#allocation3], 1
    %403 = vsyncpa [#allocation5], 1

</llo_original>
